<compile_context>
chip_gen: v6e
topology: v6e:2x2x1
jax: 0.10.0
libtpu: 0.0.40
codegen_flags: <defaults>
</compile_context>

<pallas_src>
import functools

import jax
import jax.numpy as jnp
import numpy as np
from jax.experimental import pallas as pl
from jax.experimental.pallas import tpu as pltpu


_PAD_TOP = 8  # interior rows start at 8 -> sublane-aligned interior store


# ----------------------------- Pallas kernel -----------------------------

def _rb1_kernel(x_ref, w1_ref, w2_ref, o_ref, pad_ref, *, H, W, eps, slope):
    """One (n, c) pair per grid step: two depthwise 3x3 convs + 2x InstanceNorm/LeakyReLU
    + residual adds, fully fused.  x_ref/o_ref: (1, 1, H, W) VMEM blocks (W on lanes).
    w1_ref/w2_ref: (C*9,) f32 in SMEM.  pad_ref: (_PAD_TOP+H+1, W+2) VMEM scratch."""
    c = pl.program_id(1)                 # channel index (depthwise: channels independent)
    wbase = c * 9
    hw_inv = 1.0 / float(H * W)
    r0 = _PAD_TOP                        # first interior row of the padded scratch

    # Zero only the 1-pixel border (scratch persists across grid steps; the interior is
    # fully rewritten below, so this is all that is ever read un-written).  Re-zeroed every
    # step so it stays correct under per-core scratch on core-parallel (v7x) sharding.
    zrow = jnp.zeros((1, W + 2), jnp.float32)
    pad_ref[r0 - 1:r0, :] = zrow                      # zero row above interior
    pad_ref[r0 + H:r0 + H + 1, :] = zrow              # zero row below interior
    zcol = jnp.zeros((H, 1), jnp.float32)
    pad_ref[r0:r0 + H, 0:1] = zcol                    # zero col left of interior
    pad_ref[r0:r0 + H, W + 1:W + 2] = zcol            # zero col right of interior

    def dwconv3x3(inner, w_ref):
        # Depthwise 3x3, zero padding.  Per-channel scalar taps from SMEM (splat on VPU);
        # taps read the scratch ref directly (no big padded value materialized).
        pad_ref[r0:r0 + H, 1:1 + W] = inner
        acc = pad_ref[r0 - 1:r0 - 1 + H, 0:W] * w_ref[wbase]          # tap (0, 0)
        for di in range(3):
            for dj in range(3):
                if di == 0 and dj == 0:
                    continue
                acc = acc + (pad_ref[r0 - 1 + di:r0 - 1 + di + H, dj:dj + W]
                             * w_ref[wbase + 3 * di + dj])
        return acc

    def inorm_lrelu(y):
        # InstanceNorm2d(affine=False), biased variance, one-pass stats + LeakyReLU(slope).
        s1 = jnp.sum(jnp.sum(y, axis=1, keepdims=True), axis=0, keepdims=True)      # (1,1)
        s2 = jnp.sum(jnp.sum(y * y, axis=1, keepdims=True), axis=0, keepdims=True)  # (1,1)
        mean = s1 * hw_inv
        var = jnp.maximum(s2 * hw_inv - mean * mean, 0.0)
        z = (y - mean) * jax.lax.rsqrt(var + eps)
        return jnp.maximum(z, z * slope)              # LeakyReLU, slope in (0, 1)

    x1 = inorm_lrelu(dwconv3x3(x_ref[0, 0], w1_ref))
    x2 = inorm_lrelu(dwconv3x3(x1 + x_ref[0, 0], w2_ref))
    o_ref[0, 0] = x_ref[0, 0] + x1 + x2


# ----------------------------- wrapper -----------------------------

def rb1_forward(params, x_nchw, *, eps=1e-5, slope=0.1):
    """RB1 forward.  x_nchw: (N, C, H, W) float32 -> (N, C, H, W) float32.  NCHW-native:
    no layout transposes; conv biases are omitted (cancelled exactly by InstanceNorm)."""
    x = x_nchw.astype(jnp.float32)
    N, C, H, W = x.shape
    w1 = params['w1'].astype(jnp.float32).reshape(C * 9)   # (C, 3, 3) -> flat SMEM table
    w2 = params['w2'].astype(jnp.float32).reshape(C * 9)

    # VMEM budget: double-buffered in/out blocks + padded scratch (physically padded sizes).
    def rup(a, b):
        return (a + b - 1) // b * b
    blk_bytes = rup(H, 8) * rup(W, 128) * 4
    scr_bytes = rup(_PAD_TOP + H + 1, 8) * rup(W + 2, 128) * 4
    need = 4 * blk_bytes + scr_bytes + (2 << 20)
    vmem_limit = int(min(100 * 2**20, max(2 * need, 16 * 2**20)))
    # NOTE: for very large H*W (per-(n,c) frame approaching v7x's 64 MiB VMEM) an H-tiled
    # two-pass instance norm would be needed; fine for typical feature-map sizes.

    kern = functools.partial(_rb1_kernel, H=H, W=W, eps=eps, slope=slope)
    y = pl.pallas_call(
        kern,
        out_shape=jax.ShapeDtypeStruct((N, C, H, W), jnp.float32),
        grid=(N, C),
        in_specs=[
            pl.BlockSpec((1, 1, H, W), lambda n, c: (n, c, 0, 0)),
            pl.BlockSpec(memory_space=pltpu.MemorySpace.SMEM),   # w1 taps (scalars)
            pl.BlockSpec(memory_space=pltpu.MemorySpace.SMEM),   # w2 taps (scalars)
        ],
        out_specs=pl.BlockSpec((1, 1, H, W), lambda n, c: (n, c, 0, 0)),
        scratch_shapes=[pltpu.VMEM((_PAD_TOP + H + 1, W + 2), jnp.float32)],
        compiler_params=pltpu.CompilerParams(
            dimension_semantics=("parallel", "parallel"),
            vmem_limit_bytes=vmem_limit),
    )(x, w1, w2)
    return y


# ----------------------------- pure-JAX reference (for verification) -----------------------------

def rb1_reference(params, x_nchw, eps=1e-5, slope=0.1):
    C = x_nchw.shape[1]

    def basic_conv(x, w, b):
        y = jax.lax.conv_general_dilated(
            x, w[:, None, :, :], window_strides=(1, 1), padding=((1, 1), (1, 1)),
            dimension_numbers=('NCHW', 'OIHW', 'NCHW'),
            feature_group_count=C, precision=jax.lax.Precision.HIGHEST)
        y = y + b[None, :, None, None]
        m = jnp.mean(y, axis=(2, 3), keepdims=True)
        v = jnp.mean((y - m) ** 2, axis=(2, 3), keepdims=True)
        z = (y - m) * jax.lax.rsqrt(v + eps)
        return jnp.where(z >= 0, z, slope * z)

    x1 = basic_conv(x_nchw, params['w1'], params['b1'])
    x2 = basic_conv(x1 + x_nchw, params['w2'], params['b2'])
    return x_nchw + x1 + x2


# ----------------------------- init & main -----------------------------

def init_rb1(key, channels):
    # mimic PyTorch Conv2d default init; fan_in = (C / groups) * 3 * 3 = 9
    s = 1.0 / np.sqrt(9.0)
    ks = jax.random.split(key, 4)
    u = lambda k, shape: jax.random.uniform(k, shape, jnp.float32, -s, s)
    return {'w1': u(ks[0], (channels, 3, 3)), 'b1': u(ks[1], (channels,)),
            'w2': u(ks[2], (channels, 3, 3)), 'b2': u(ks[3], (channels,))}


if __name__ == "__main__":
    key = jax.random.PRNGKey(0)
    pkey, xkey = jax.random.split(key)

    N, C, H, W = 2, 4, 16, 16           # RB1 requires in_channels == out_channels
    params = init_rb1(pkey, C)
    x = jax.random.normal(xkey, (N, C, H, W), jnp.float32)

    fwd = jax.jit(functools.partial(rb1_forward, params))
    out = fwd(x)
    jax.block_until_ready(out)

    assert out.shape == (N, C, H, W)
    assert bool(jnp.all(jnp.isfinite(out)))

    ref = rb1_reference(params, x)
    err = float(jnp.max(jnp.abs(out - ref)))
    assert err < 1e-3, f"mismatch vs reference: {err}"

    print("KERNEL_OK")
</pallas_src>

<mosaic_0001>
module attributes {stable_mosaic.version = 11 : i64} {
  func.func @_rb1_kernel(%arg0: i32, %arg1: i32, %arg2: memref<1x1x16x16xf32, #tpu.memory_space<vmem>>, %arg3: memref<36xf32, #tpu.memory_space<smem>>, %arg4: memref<36xf32, #tpu.memory_space<smem>>, %arg5: memref<1x1x16x16xf32, #tpu.memory_space<vmem>>, %arg6: memref<25x18xf32, #tpu.memory_space<vmem>>) attributes {dimension_semantics = [#tpu.dimension_semantics<parallel>, #tpu.dimension_semantics<parallel>], iteration_bounds = array<i64: 2, 4>, scalar_prefetch = 0 : i64, scratch_operands = 1 : i64, tpu.core_type = #tpu.core_type<tc>, window_params = [{transform_indices = @transform_0, window_bounds = array<i64: 1, 1, 16, 16>}, {transform_indices = @transform_1, window_bounds = array<i64: 36>}, {transform_indices = @transform_2, window_bounds = array<i64: 36>}, {transform_indices = @transform_3, window_bounds = array<i64: 1, 1, 16, 16>}]} {
    %c9_i32 = arith.constant 9 : i32
    %0 = arith.muli %arg1, %c9_i32 : i32
    %cst = arith.constant 0.000000e+00 : f32
    %1 = vector.broadcast %cst : f32 to vector<1x18xf32>
    %c7 = arith.constant 7 : index
    %c0 = arith.constant 0 : index
    %2 = vector.load %arg6[%c7, %c0] : memref<25x18xf32, #tpu.memory_space<vmem>>, vector<1x18xf32>
    tpu.vector_store %arg6[%c7, %c0], %1 {strides = array<i32>} : memref<25x18xf32, #tpu.memory_space<vmem>>, vector<1x18xf32>,
    %c24 = arith.constant 24 : index
    %c0_0 = arith.constant 0 : index
    %3 = vector.load %arg6[%c24, %c0_0] : memref<25x18xf32, #tpu.memory_space<vmem>>, vector<1x18xf32>
    tpu.vector_store %arg6[%c24, %c0_0], %1 {strides = array<i32>} : memref<25x18xf32, #tpu.memory_space<vmem>>, vector<1x18xf32>,
    %cst_1 = arith.constant 0.000000e+00 : f32
    %4 = vector.broadcast %cst_1 : f32 to vector<16x1xf32>
    %c8 = arith.constant 8 : index
    %c0_2 = arith.constant 0 : index
    %5 = vector.load %arg6[%c8, %c0_2] : memref<25x18xf32, #tpu.memory_space<vmem>>, vector<16x1xf32>
    tpu.vector_store %arg6[%c8, %c0_2], %4 {strides = array<i32>} : memref<25x18xf32, #tpu.memory_space<vmem>>, vector<16x1xf32>,
    %c8_3 = arith.constant 8 : index
    %c17 = arith.constant 17 : index
    %6 = vector.load %arg6[%c8_3, %c17] : memref<25x18xf32, #tpu.memory_space<vmem>>, vector<16x1xf32>
    tpu.vector_store %arg6[%c8_3, %c17], %4 {strides = array<i32>} : memref<25x18xf32, #tpu.memory_space<vmem>>, vector<16x1xf32>,
    %c0_4 = arith.constant 0 : index
    %c0_5 = arith.constant 0 : index
    %c0_6 = arith.constant 0 : index
    %c0_7 = arith.constant 0 : index
    %7 = vector.load %arg2[%c0_4, %c0_5, %c0_6, %c0_7] : memref<1x1x16x16xf32, #tpu.memory_space<vmem>>, vector<1x1x16x16xf32>
    %8 = vector.shape_cast %7 : vector<1x1x16x16xf32> to vector<16x16xf32>
    %c8_8 = arith.constant 8 : index
    %c1 = arith.constant 1 : index
    %9 = vector.load %arg6[%c8_8, %c1] : memref<25x18xf32, #tpu.memory_space<vmem>>, vector<16x16xf32>
    tpu.vector_store %arg6[%c8_8, %c1], %8 {strides = array<i32>} : memref<25x18xf32, #tpu.memory_space<vmem>>, vector<16x16xf32>,
    %c7_9 = arith.constant 7 : index
    %c0_10 = arith.constant 0 : index
    %10 = vector.load %arg6[%c7_9, %c0_10] : memref<25x18xf32, #tpu.memory_space<vmem>>, vector<16x16xf32>
    %11 = arith.index_cast %0 : i32 to index
    %12 = memref.load %arg3[%11] : memref<36xf32, #tpu.memory_space<smem>>
    %13 = vector.broadcast %12 : f32 to vector<16x16xf32>
    %14 = arith.mulf %10, %13 : vector<16x16xf32>
    %c7_11 = arith.constant 7 : index
    %c1_12 = arith.constant 1 : index
    %15 = vector.load %arg6[%c7_11, %c1_12] : memref<25x18xf32, #tpu.memory_space<vmem>>, vector<16x16xf32>
    %c0_i32 = arith.constant 0 : i32
    %16 = arith.addi %0, %c0_i32 : i32
    %c1_i32 = arith.constant 1 : i32
    %17 = arith.addi %16, %c1_i32 : i32
    %18 = arith.index_cast %17 : i32 to index
    %19 = memref.load %arg3[%18] : memref<36xf32, #tpu.memory_space<smem>>
    %20 = vector.broadcast %19 : f32 to vector<16x16xf32>
    %21 = arith.mulf %15, %20 : vector<16x16xf32>
    %22 = arith.addf %14, %21 : vector<16x16xf32>
    %c7_13 = arith.constant 7 : index
    %c2 = arith.constant 2 : index
    %23 = vector.load %arg6[%c7_13, %c2] : memref<25x18xf32, #tpu.memory_space<vmem>>, vector<16x16xf32>
    %c0_i32_14 = arith.constant 0 : i32
    %24 = arith.addi %0, %c0_i32_14 : i32
    %c2_i32 = arith.constant 2 : i32
    %25 = arith.addi %24, %c2_i32 : i32
    %26 = arith.index_cast %25 : i32 to index
    %27 = memref.load %arg3[%26] : memref<36xf32, #tpu.memory_space<smem>>
    %28 = vector.broadcast %27 : f32 to vector<16x16xf32>
    %29 = arith.mulf %23, %28 : vector<16x16xf32>
    %30 = arith.addf %22, %29 : vector<16x16xf32>
    %c8_15 = arith.constant 8 : index
    %c0_16 = arith.constant 0 : index
    %31 = vector.load %arg6[%c8_15, %c0_16] : memref<25x18xf32, #tpu.memory_space<vmem>>, vector<16x16xf32>
    %c3_i32 = arith.constant 3 : i32
    %32 = arith.addi %0, %c3_i32 : i32
    %c0_i32_17 = arith.constant 0 : i32
    %33 = arith.addi %32, %c0_i32_17 : i32
    %34 = arith.index_cast %33 : i32 to index
    %35 = memref.load %arg3[%34] : memref<36xf32, #tpu.memory_space<smem>>
    %36 = vector.broadcast %35 : f32 to vector<16x16xf32>
    %37 = arith.mulf %31, %36 : vector<16x16xf32>
    %38 = arith.addf %30, %37 : vector<16x16xf32>
    %c8_18 = arith.constant 8 : index
    %c1_19 = arith.constant 1 : index
    %39 = vector.load %arg6[%c8_18, %c1_19] : memref<25x18xf32, #tpu.memory_space<vmem>>, vector<16x16xf32>
    %c3_i32_20 = arith.constant 3 : i32
    %40 = arith.addi %0, %c3_i32_20 : i32
    %c1_i32_21 = arith.constant 1 : i32
    %41 = arith.addi %40, %c1_i32_21 : i32
    %42 = arith.index_cast %41 : i32 to index
    %43 = memref.load %arg3[%42] : memref<36xf32, #tpu.memory_space<smem>>
    %44 = vector.broadcast %43 : f32 to vector<16x16xf32>
    %45 = arith.mulf %39, %44 : vector<16x16xf32>
    %46 = arith.addf %38, %45 : vector<16x16xf32>
    %c8_22 = arith.constant 8 : index
    %c2_23 = arith.constant 2 : index
    %47 = vector.load %arg6[%c8_22, %c2_23] : memref<25x18xf32, #tpu.memory_space<vmem>>, vector<16x16xf32>
    %c3_i32_24 = arith.constant 3 : i32
    %48 = arith.addi %0, %c3_i32_24 : i32
    %c2_i32_25 = arith.constant 2 : i32
    %49 = arith.addi %48, %c2_i32_25 : i32
    %50 = arith.index_cast %49 : i32 to index
    %51 = memref.load %arg3[%50] : memref<36xf32, #tpu.memory_space<smem>>
    %52 = vector.broadcast %51 : f32 to vector<16x16xf32>
    %53 = arith.mulf %47, %52 : vector<16x16xf32>
    %54 = arith.addf %46, %53 : vector<16x16xf32>
    %c9 = arith.constant 9 : index
    %c0_26 = arith.constant 0 : index
    %55 = vector.load %arg6[%c9, %c0_26] : memref<25x18xf32, #tpu.memory_space<vmem>>, vector<16x16xf32>
    %c6_i32 = arith.constant 6 : i32
    %56 = arith.addi %0, %c6_i32 : i32
    %c0_i32_27 = arith.constant 0 : i32
    %57 = arith.addi %56, %c0_i32_27 : i32
    %58 = arith.index_cast %57 : i32 to index
    %59 = memref.load %arg3[%58] : memref<36xf32, #tpu.memory_space<smem>>
    %60 = vector.broadcast %59 : f32 to vector<16x16xf32>
    %61 = arith.mulf %55, %60 : vector<16x16xf32>
    %62 = arith.addf %54, %61 : vector<16x16xf32>
    %c9_28 = arith.constant 9 : index
    %c1_29 = arith.constant 1 : index
    %63 = vector.load %arg6[%c9_28, %c1_29] : memref<25x18xf32, #tpu.memory_space<vmem>>, vector<16x16xf32>
    %c6_i32_30 = arith.constant 6 : i32
    %64 = arith.addi %0, %c6_i32_30 : i32
    %c1_i32_31 = arith.constant 1 : i32
    %65 = arith.addi %64, %c1_i32_31 : i32
    %66 = arith.index_cast %65 : i32 to index
    %67 = memref.load %arg3[%66] : memref<36xf32, #tpu.memory_space<smem>>
    %68 = vector.broadcast %67 : f32 to vector<16x16xf32>
    %69 = arith.mulf %63, %68 : vector<16x16xf32>
    %70 = arith.addf %62, %69 : vector<16x16xf32>
    %c9_32 = arith.constant 9 : index
    %c2_33 = arith.constant 2 : index
    %71 = vector.load %arg6[%c9_32, %c2_33] : memref<25x18xf32, #tpu.memory_space<vmem>>, vector<16x16xf32>
    %c6_i32_34 = arith.constant 6 : i32
    %72 = arith.addi %0, %c6_i32_34 : i32
    %c2_i32_35 = arith.constant 2 : i32
    %73 = arith.addi %72, %c2_i32_35 : i32
    %74 = arith.index_cast %73 : i32 to index
    %75 = memref.load %arg3[%74] : memref<36xf32, #tpu.memory_space<smem>>
    %76 = vector.broadcast %75 : f32 to vector<16x16xf32>
    %77 = arith.mulf %71, %76 : vector<16x16xf32>
    %78 = arith.addf %70, %77 : vector<16x16xf32>
    %cst_36 = arith.constant dense<0.000000e+00> : vector<16xf32>
    %79 = vector.multi_reduction <add>, %78, %cst_36 [1] : vector<16x16xf32> to vector<16xf32>
    %80 = vector.shape_cast %79 : vector<16xf32> to vector<16x1xf32>
    %cst_37 = arith.constant dense<0.000000e+00> : vector<1xf32>
    %81 = vector.multi_reduction <add>, %80, %cst_37 [0] : vector<16x1xf32> to vector<1xf32>
    %82 = vector.shape_cast %81 : vector<1xf32> to vector<1x1xf32>
    %83 = arith.mulf %78, %78 : vector<16x16xf32>
    %cst_38 = arith.constant dense<0.000000e+00> : vector<16xf32>
    %84 = vector.multi_reduction <add>, %83, %cst_38 [1] : vector<16x16xf32> to vector<16xf32>
    %85 = vector.shape_cast %84 : vector<16xf32> to vector<16x1xf32>
    %cst_39 = arith.constant dense<0.000000e+00> : vector<1xf32>
    %86 = vector.multi_reduction <add>, %85, %cst_39 [0] : vector<16x1xf32> to vector<1xf32>
    %87 = vector.shape_cast %86 : vector<1xf32> to vector<1x1xf32>
    %cst_40 = arith.constant 3.906250e-03 : f32
    %88 = vector.broadcast %cst_40 : f32 to vector<1x1xf32>
    %89 = arith.mulf %82, %88 : vector<1x1xf32>
    %cst_41 = arith.constant 3.906250e-03 : f32
    %90 = vector.broadcast %cst_41 : f32 to vector<1x1xf32>
    %91 = arith.mulf %87, %90 : vector<1x1xf32>
    %92 = arith.mulf %89, %89 : vector<1x1xf32>
    %93 = arith.subf %91, %92 : vector<1x1xf32>
    %cst_42 = arith.constant 0.000000e+00 : f32
    %94 = vector.broadcast %cst_42 : f32 to vector<1x1xf32>
    %95 = arith.maximumf %93, %94 : vector<1x1xf32>
    %96 = vector.broadcast %89 : vector<1x1xf32> to vector<16x16xf32>
    %97 = arith.subf %78, %96 : vector<16x16xf32>
    %cst_43 = arith.constant 9.99999974E-6 : f32
    %98 = vector.broadcast %cst_43 : f32 to vector<1x1xf32>
    %99 = arith.addf %95, %98 : vector<1x1xf32>
    %100 = math.rsqrt %99 : vector<1x1xf32>
    %101 = vector.broadcast %100 : vector<1x1xf32> to vector<16x16xf32>
    %102 = arith.mulf %97, %101 : vector<16x16xf32>
    %cst_44 = arith.constant 1.000000e-01 : f32
    %103 = vector.broadcast %cst_44 : f32 to vector<16x16xf32>
    %104 = arith.mulf %102, %103 : vector<16x16xf32>
    %105 = arith.maximumf %102, %104 : vector<16x16xf32>
    %c0_45 = arith.constant 0 : index
    %c0_46 = arith.constant 0 : index
    %c0_47 = arith.constant 0 : index
    %c0_48 = arith.constant 0 : index
    %106 = vector.load %arg2[%c0_45, %c0_46, %c0_47, %c0_48] : memref<1x1x16x16xf32, #tpu.memory_space<vmem>>, vector<1x1x16x16xf32>
    %107 = vector.shape_cast %106 : vector<1x1x16x16xf32> to vector<16x16xf32>
    %108 = arith.addf %105, %107 : vector<16x16xf32>
    %c8_49 = arith.constant 8 : index
    %c1_50 = arith.constant 1 : index
    %109 = vector.load %arg6[%c8_49, %c1_50] : memref<25x18xf32, #tpu.memory_space<vmem>>, vector<16x16xf32>
    tpu.vector_store %arg6[%c8_49, %c1_50], %108 {strides = array<i32>} : memref<25x18xf32, #tpu.memory_space<vmem>>, vector<16x16xf32>,
    %c7_51 = arith.constant 7 : index
    %c0_52 = arith.constant 0 : index
    %110 = vector.load %arg6[%c7_51, %c0_52] : memref<25x18xf32, #tpu.memory_space<vmem>>, vector<16x16xf32>
    %111 = arith.index_cast %0 : i32 to index
    %112 = memref.load %arg4[%111] : memref<36xf32, #tpu.memory_space<smem>>
    %113 = vector.broadcast %112 : f32 to vector<16x16xf32>
    %114 = arith.mulf %110, %113 : vector<16x16xf32>
    %c7_53 = arith.constant 7 : index
    %c1_54 = arith.constant 1 : index
    %115 = vector.load %arg6[%c7_53, %c1_54] : memref<25x18xf32, #tpu.memory_space<vmem>>, vector<16x16xf32>
    %c0_i32_55 = arith.constant 0 : i32
    %116 = arith.addi %0, %c0_i32_55 : i32
    %c1_i32_56 = arith.constant 1 : i32
    %117 = arith.addi %116, %c1_i32_56 : i32
    %118 = arith.index_cast %117 : i32 to index
    %119 = memref.load %arg4[%118] : memref<36xf32, #tpu.memory_space<smem>>
    %120 = vector.broadcast %119 : f32 to vector<16x16xf32>
    %121 = arith.mulf %115, %120 : vector<16x16xf32>
    %122 = arith.addf %114, %121 : vector<16x16xf32>
    %c7_57 = arith.constant 7 : index
    %c2_58 = arith.constant 2 : index
    %123 = vector.load %arg6[%c7_57, %c2_58] : memref<25x18xf32, #tpu.memory_space<vmem>>, vector<16x16xf32>
    %c0_i32_59 = arith.constant 0 : i32
    %124 = arith.addi %0, %c0_i32_59 : i32
    %c2_i32_60 = arith.constant 2 : i32
    %125 = arith.addi %124, %c2_i32_60 : i32
    %126 = arith.index_cast %125 : i32 to index
    %127 = memref.load %arg4[%126] : memref<36xf32, #tpu.memory_space<smem>>
    %128 = vector.broadcast %127 : f32 to vector<16x16xf32>
    %129 = arith.mulf %123, %128 : vector<16x16xf32>
    %130 = arith.addf %122, %129 : vector<16x16xf32>
    %c8_61 = arith.constant 8 : index
    %c0_62 = arith.constant 0 : index
    %131 = vector.load %arg6[%c8_61, %c0_62] : memref<25x18xf32, #tpu.memory_space<vmem>>, vector<16x16xf32>
    %c3_i32_63 = arith.constant 3 : i32
    %132 = arith.addi %0, %c3_i32_63 : i32
    %c0_i32_64 = arith.constant 0 : i32
    %133 = arith.addi %132, %c0_i32_64 : i32
    %134 = arith.index_cast %133 : i32 to index
    %135 = memref.load %arg4[%134] : memref<36xf32, #tpu.memory_space<smem>>
    %136 = vector.broadcast %135 : f32 to vector<16x16xf32>
    %137 = arith.mulf %131, %136 : vector<16x16xf32>
    %138 = arith.addf %130, %137 : vector<16x16xf32>
    %c8_65 = arith.constant 8 : index
    %c1_66 = arith.constant 1 : index
    %139 = vector.load %arg6[%c8_65, %c1_66] : memref<25x18xf32, #tpu.memory_space<vmem>>, vector<16x16xf32>
    %c3_i32_67 = arith.constant 3 : i32
    %140 = arith.addi %0, %c3_i32_67 : i32
    %c1_i32_68 = arith.constant 1 : i32
    %141 = arith.addi %140, %c1_i32_68 : i32
    %142 = arith.index_cast %141 : i32 to index
    %143 = memref.load %arg4[%142] : memref<36xf32, #tpu.memory_space<smem>>
    %144 = vector.broadcast %143 : f32 to vector<16x16xf32>
    %145 = arith.mulf %139, %144 : vector<16x16xf32>
    %146 = arith.addf %138, %145 : vector<16x16xf32>
    %c8_69 = arith.constant 8 : index
    %c2_70 = arith.constant 2 : index
    %147 = vector.load %arg6[%c8_69, %c2_70] : memref<25x18xf32, #tpu.memory_space<vmem>>, vector<16x16xf32>
    %c3_i32_71 = arith.constant 3 : i32
    %148 = arith.addi %0, %c3_i32_71 : i32
    %c2_i32_72 = arith.constant 2 : i32
    %149 = arith.addi %148, %c2_i32_72 : i32
    %150 = arith.index_cast %149 : i32 to index
    %151 = memref.load %arg4[%150] : memref<36xf32, #tpu.memory_space<smem>>
    %152 = vector.broadcast %151 : f32 to vector<16x16xf32>
    %153 = arith.mulf %147, %152 : vector<16x16xf32>
    %154 = arith.addf %146, %153 : vector<16x16xf32>
    %c9_73 = arith.constant 9 : index
    %c0_74 = arith.constant 0 : index
    %155 = vector.load %arg6[%c9_73, %c0_74] : memref<25x18xf32, #tpu.memory_space<vmem>>, vector<16x16xf32>
    %c6_i32_75 = arith.constant 6 : i32
    %156 = arith.addi %0, %c6_i32_75 : i32
    %c0_i32_76 = arith.constant 0 : i32
    %157 = arith.addi %156, %c0_i32_76 : i32
    %158 = arith.index_cast %157 : i32 to index
    %159 = memref.load %arg4[%158] : memref<36xf32, #tpu.memory_space<smem>>
    %160 = vector.broadcast %159 : f32 to vector<16x16xf32>
    %161 = arith.mulf %155, %160 : vector<16x16xf32>
    %162 = arith.addf %154, %161 : vector<16x16xf32>
    %c9_77 = arith.constant 9 : index
    %c1_78 = arith.constant 1 : index
    %163 = vector.load %arg6[%c9_77, %c1_78] : memref<25x18xf32, #tpu.memory_space<vmem>>, vector<16x16xf32>
    %c6_i32_79 = arith.constant 6 : i32
    %164 = arith.addi %0, %c6_i32_79 : i32
    %c1_i32_80 = arith.constant 1 : i32
    %165 = arith.addi %164, %c1_i32_80 : i32
    %166 = arith.index_cast %165 : i32 to index
    %167 = memref.load %arg4[%166] : memref<36xf32, #tpu.memory_space<smem>>
    %168 = vector.broadcast %167 : f32 to vector<16x16xf32>
    %169 = arith.mulf %163, %168 : vector<16x16xf32>
    %170 = arith.addf %162, %169 : vector<16x16xf32>
    %c9_81 = arith.constant 9 : index
    %c2_82 = arith.constant 2 : index
    %171 = vector.load %arg6[%c9_81, %c2_82] : memref<25x18xf32, #tpu.memory_space<vmem>>, vector<16x16xf32>
    %c6_i32_83 = arith.constant 6 : i32
    %172 = arith.addi %0, %c6_i32_83 : i32
    %c2_i32_84 = arith.constant 2 : i32
    %173 = arith.addi %172, %c2_i32_84 : i32
    %174 = arith.index_cast %173 : i32 to index
    %175 = memref.load %arg4[%174] : memref<36xf32, #tpu.memory_space<smem>>
    %176 = vector.broadcast %175 : f32 to vector<16x16xf32>
    %177 = arith.mulf %171, %176 : vector<16x16xf32>
    %178 = arith.addf %170, %177 : vector<16x16xf32>
    %cst_85 = arith.constant dense<0.000000e+00> : vector<16xf32>
    %179 = vector.multi_reduction <add>, %178, %cst_85 [1] : vector<16x16xf32> to vector<16xf32>
    %180 = vector.shape_cast %179 : vector<16xf32> to vector<16x1xf32>
    %cst_86 = arith.constant dense<0.000000e+00> : vector<1xf32>
    %181 = vector.multi_reduction <add>, %180, %cst_86 [0] : vector<16x1xf32> to vector<1xf32>
    %182 = vector.shape_cast %181 : vector<1xf32> to vector<1x1xf32>
    %183 = arith.mulf %178, %178 : vector<16x16xf32>
    %cst_87 = arith.constant dense<0.000000e+00> : vector<16xf32>
    %184 = vector.multi_reduction <add>, %183, %cst_87 [1] : vector<16x16xf32> to vector<16xf32>
    %185 = vector.shape_cast %184 : vector<16xf32> to vector<16x1xf32>
    %cst_88 = arith.constant dense<0.000000e+00> : vector<1xf32>
    %186 = vector.multi_reduction <add>, %185, %cst_88 [0] : vector<16x1xf32> to vector<1xf32>
    %187 = vector.shape_cast %186 : vector<1xf32> to vector<1x1xf32>
    %cst_89 = arith.constant 3.906250e-03 : f32
    %188 = vector.broadcast %cst_89 : f32 to vector<1x1xf32>
    %189 = arith.mulf %182, %188 : vector<1x1xf32>
    %cst_90 = arith.constant 3.906250e-03 : f32
    %190 = vector.broadcast %cst_90 : f32 to vector<1x1xf32>
    %191 = arith.mulf %187, %190 : vector<1x1xf32>
    %192 = arith.mulf %189, %189 : vector<1x1xf32>
    %193 = arith.subf %191, %192 : vector<1x1xf32>
    %cst_91 = arith.constant 0.000000e+00 : f32
    %194 = vector.broadcast %cst_91 : f32 to vector<1x1xf32>
    %195 = arith.maximumf %193, %194 : vector<1x1xf32>
    %196 = vector.broadcast %189 : vector<1x1xf32> to vector<16x16xf32>
    %197 = arith.subf %178, %196 : vector<16x16xf32>
    %cst_92 = arith.constant 9.99999974E-6 : f32
    %198 = vector.broadcast %cst_92 : f32 to vector<1x1xf32>
    %199 = arith.addf %195, %198 : vector<1x1xf32>
    %200 = math.rsqrt %199 : vector<1x1xf32>
    %201 = vector.broadcast %200 : vector<1x1xf32> to vector<16x16xf32>
    %202 = arith.mulf %197, %201 : vector<16x16xf32>
    %cst_93 = arith.constant 1.000000e-01 : f32
    %203 = vector.broadcast %cst_93 : f32 to vector<16x16xf32>
    %204 = arith.mulf %202, %203 : vector<16x16xf32>
    %205 = arith.maximumf %202, %204 : vector<16x16xf32>
    %c0_94 = arith.constant 0 : index
    %c0_95 = arith.constant 0 : index
    %c0_96 = arith.constant 0 : index
    %c0_97 = arith.constant 0 : index
    %206 = vector.load %arg2[%c0_94, %c0_95, %c0_96, %c0_97] : memref<1x1x16x16xf32, #tpu.memory_space<vmem>>, vector<1x1x16x16xf32>
    %207 = vector.shape_cast %206 : vector<1x1x16x16xf32> to vector<16x16xf32>
    %208 = arith.addf %207, %105 : vector<16x16xf32>
    %209 = arith.addf %208, %205 : vector<16x16xf32>
    %c0_98 = arith.constant 0 : index
    %c0_99 = arith.constant 0 : index
    %c0_100 = arith.constant 0 : index
    %c0_101 = arith.constant 0 : index
    %210 = vector.load %arg5[%c0_98, %c0_99, %c0_100, %c0_101] : memref<1x1x16x16xf32, #tpu.memory_space<vmem>>, vector<1x1x16x16xf32>
    %211 = vector.shape_cast %210 : vector<1x1x16x16xf32> to vector<16x16xf32>
    %212 = vector.shape_cast %209 : vector<16x16xf32> to vector<1x1x16x16xf32>
    tpu.vector_store %arg5[%c0_98, %c0_99, %c0_100, %c0_101], %212 {strides = array<i32>} : memref<1x1x16x16xf32, #tpu.memory_space<vmem>>, vector<1x1x16x16xf32>,
    return
  }
  func.func @transform_0(%arg0: i32, %arg1: i32) -> (i32, i32, i32, i32) {
    %c0_i32 = arith.constant 0 : i32
    %c0_i32_0 = arith.constant 0 : i32
    %c0_i32_1 = arith.constant 0 : i32
    return %arg0, %arg1, %c0_i32, %c0_i32_0 : i32, i32, i32, i32
  }
  func.func @transform_1(%arg0: i32, %arg1: i32) -> i32 {
    %c0_i32 = arith.constant 0 : i32
    %c0_i32_0 = arith.constant 0 : i32
    return %c0_i32 : i32
  }
  func.func @transform_2(%arg0: i32, %arg1: i32) -> i32 {
    %c0_i32 = arith.constant 0 : i32
    %c0_i32_0 = arith.constant 0 : i32
    return %c0_i32 : i32
  }
  func.func @transform_3(%arg0: i32, %arg1: i32) -> (i32, i32, i32, i32) {
    %c0_i32 = arith.constant 0 : i32
    %c0_i32_0 = arith.constant 0 : i32
    %c0_i32_1 = arith.constant 0 : i32
    return %arg0, %arg1, %c0_i32, %c0_i32_0 : i32, i32, i32, i32
  }
}

</mosaic_0001>

<llo_original>
// kernel: rb1_forward.1
$region0: #{rb1_forward.1}
  #allocation0 [shape = 'u32[]', space=smem, size = 0x4, offset = 0x4, fixed_abs, tag = 'smem constant byte address 0x4 - core index']
  #allocation1 [shape = 'u32[144,128]{1,0:T(1,128)}', space=vmem, size = 0x12000, scoped, tag = 'internal scratch']
  #allocation2 [shape = 'f32[25,18]{1,0:T(8,128)}', space=vmem, size = 0x4000, scoped, tag = 'scratch operand']
  %s0 = inlined_call_operand.hbm [shape: f32[2,4,16,16], index: 0, kind: input, shape index: {}]
  %s1 = inlined_call_operand.hbm [shape: f32[36], index: 1, kind: input, shape index: {}]
  %s2 = inlined_call_operand.vmem [shape: f32[36], index: 2, kind: input, shape index: {}]
  %s3 = inlined_call_operand.hbm [shape: f32[2,4,16,16], index: 3, kind: output, shape index: {}]
  %s4 = sld [smem:[#allocation0]]
  $region57: #{rb1_forward.1} parent=0
    _
  %s6 = ssub.s32 1, %s4
  %s7 = scalar_select 0, %s6, %s4
  $region1: #{rb1_forward.1} parent=0
    #allocation3 [shape = 'u8[16384]{0}', space=vmem, size = 0x4000, scoped, tag = 'input window, operand 0']
    #allocation4 [shape = 's32[2]{0}', space=sflag, size = 0x8, scoped, tag = 'scoped memory for rb1_forward.1']
    #allocation5 [shape = 's32[2]{0}', space=sflag, size = 0x8, scoped, tag = 'scoped memory for rb1_forward.1']
    #allocation6 [shape = 's32[2]{0}', space=sflag, size = 0x8, scoped, tag = 'scoped memory for rb1_forward.1']
    #allocation7 [shape = 's32[2]{0}', space=sflag, size = 0x8, scoped, tag = 'scoped memory for rb1_forward.1']
    #allocation8 [shape = 'u8[512]{0}', space=smem, size = 0x200, scoped, tag = 'input window, operand 1, single buffered']
    #allocation9 [shape = 'u8[512]{0}', space=smem, size = 0x200, scoped, tag = 'input window, operand 2, single buffered']
    #allocation10 [shape = 'u8[16384]{0}', space=vmem, size = 0x4000, scoped, tag = 'output window, operand 0']
    %8 = vsyncpa [#allocation4], 0
    %s9 = scalar_lea.sflag [#allocation4], 1
    %10 = vsyncpa %s9, 0
    %11 = vsyncpa [#allocation6], 0
    %12 = vsyncpa [#allocation7], 0
    %13 = vsyncpa [#allocation5], 0
    %s14 = scalar_lea.sflag [#allocation5], 1
    %15 = vsyncpa %s14, 0
    loop: start=0, step=1, limit=10
    $region2: #{rb1_forward.1} parent=1 // loop_pre_header
      _
    $region3: #{rb1_forward.1} parent=1 // loop_header
      %s17 = sphi 0, %s21
      %p18 = scmp.ge.s32.totalorder %s17, 10
      %s24 = sphi 0, %s36
      %s25 = sphi 0, %s32
      %s26 = sphi 0, %s24
      %s27 = sphi 0, %s25
      %s28 = sphi 0, %s26
      %s29 = sphi 0, %s27
      %s41 = sphi 0, %s43
      %s44 = sphi 0, %s41
      %s45 = sphi 0, %s44
      %s61 = sphi 0, %s45
      %s65 = sphi 0, %s65
      %s67 = sphi 0, %s65
      %s68 = sphi 0, %s67
      %s82 = sphi 0, %s68
      %s86 = sphi 0, %s86
      %s88 = sphi 0, %s86
      %s89 = sphi 0, %s88
      %s103 = sphi 0, %s89
      %s111 = sphi 0, %s113
      %s114 = sphi 0, %s111
      %s115 = sphi 0, %s114
      %s131 = sphi 0, %s115
    $region4: #{rb1_forward.1} parent=1 // loop_header_branch
      %20 = sbr.rel (%p18) target = $region8
    $region5: #{rb1_forward.1} parent=1 // loop_body
      %s22 = ssub.s32 %s17, 1
      %s23 = ssub.s32 %s17, 2
      %s30 = sadd.s32 1, %s25
      %p31 = scmp.ge.s32.totalorder %s30, 4
      %s32 = scalar_select %p31, 0, %s30
      %s33 = sadd.s32 1, %s24
      %s34 = scalar_select %p31, %s33, %s24
      %p35 = scmp.ge.s32.totalorder %s34, 2
      %s36 = scalar_select %p35, 0, %s34
      %s37 = ssub.s32 %s24, %s36
      %s38 = ssub.s32 %s25, %s32
      %s39 = sor.u32 %s37, %s38
      %p40 = scmp.eq.s32.totalorder %s39, 0
      %s42 = sadd.s32 %s41, 1
      %s43 = scalar_select %p40, %s41, %s42
      %p46 = pneg %p40
      %p47 = scmp.eq.s32.totalorder %s17, 7
      %p48 = por %p46, %p47
      %p49 = scmp.ne.s32.totalorder %s41, %s44
      %p50 = scmp.eq.s32.totalorder %s17, 0
      %p51 = por %p49, %p50
      %p52 = scmp.ne.s32.totalorder %s41, %s44
      %p53 = scmp.eq.s32.totalorder %s22, 7
      %p54 = por %p52, %p53
      %p55 = scmp.ne.s32.totalorder %s44, %s45
      %p56 = scmp.eq.s32.totalorder %s22, 0
      %p57 = por %p55, %p56
      %p58 = scmp.ne.s32.totalorder %s44, %s45
      %p59 = scmp.eq.s32.totalorder %s23, 7
      %p60 = por %p58, %p59
      %p62 = scmp.ne.s32.totalorder %s45, %s61
      %p63 = scmp.eq.s32.totalorder %s23, 0
      %p64 = por %p62, %p63
      %s66 = sadd.s32 %s65, 1
      %p69 = scmp.eq.s32.totalorder %s17, 7
      %p70 = scmp.ne.s32.totalorder %s65, %s67
      %p71 = scmp.eq.s32.totalorder %s17, 0
      %p72 = por %p70, %p71
      %p73 = scmp.ne.s32.totalorder %s65, %s67
      %p74 = scmp.eq.s32.totalorder %s22, 7
      %p75 = por %p73, %p74
      %p76 = scmp.ne.s32.totalorder %s67, %s68
      %p77 = scmp.eq.s32.totalorder %s22, 0
      %p78 = por %p76, %p77
      %p79 = scmp.ne.s32.totalorder %s67, %s68
      %p80 = scmp.eq.s32.totalorder %s23, 7
      %p81 = por %p79, %p80
      %p83 = scmp.ne.s32.totalorder %s68, %s82
      %p84 = scmp.eq.s32.totalorder %s23, 0
      %p85 = por %p83, %p84
      %s87 = sadd.s32 %s86, 1
      %p90 = scmp.eq.s32.totalorder %s17, 7
      %p91 = scmp.ne.s32.totalorder %s86, %s88
      %p92 = scmp.eq.s32.totalorder %s17, 0
      %p93 = por %p91, %p92
      %p94 = scmp.ne.s32.totalorder %s86, %s88
      %p95 = scmp.eq.s32.totalorder %s22, 7
      %p96 = por %p94, %p95
      %p97 = scmp.ne.s32.totalorder %s88, %s89
      %p98 = scmp.eq.s32.totalorder %s22, 0
      %p99 = por %p97, %p98
      %p100 = scmp.ne.s32.totalorder %s88, %s89
      %p101 = scmp.eq.s32.totalorder %s23, 7
      %p102 = por %p100, %p101
      %p104 = scmp.ne.s32.totalorder %s89, %s103
      %p105 = scmp.eq.s32.totalorder %s23, 0
      %p106 = por %p104, %p105
      %s107 = ssub.s32 %s24, %s36
      %s108 = ssub.s32 %s25, %s32
      %s109 = sor.u32 %s107, %s108
      %p110 = scmp.eq.s32.totalorder %s109, 0
      %s112 = sadd.s32 %s111, 1
      %s113 = scalar_select %p110, %s111, %s112
      %p116 = pneg %p110
      %p117 = scmp.eq.s32.totalorder %s17, 7
      %p118 = por %p116, %p117
      %p119 = scmp.ne.s32.totalorder %s111, %s114
      %p120 = scmp.eq.s32.totalorder %s17, 0
      %p121 = por %p119, %p120
      %p122 = scmp.ne.s32.totalorder %s111, %s114
      %p123 = scmp.eq.s32.totalorder %s22, 7
      %p124 = por %p122, %p123
      %p125 = scmp.ne.s32.totalorder %s114, %s115
      %p126 = scmp.eq.s32.totalorder %s22, 0
      %p127 = por %p125, %p126
      %p128 = scmp.ne.s32.totalorder %s114, %s115
      %p129 = scmp.eq.s32.totalorder %s23, 7
      %p130 = por %p128, %p129
      %p132 = scmp.ne.s32.totalorder %s115, %s131
      %p133 = scmp.eq.s32.totalorder %s23, 0
      %p134 = por %p132, %p133
      %p135 = scmp.le.s32.totalorder 1, %s17
      %p136 = scmp.lt.s32.totalorder %s17, 9
      %p137 = pnand %p135, %p136
      %p138 = pneg %p137
      // Predicated region
      $region9: #{rb1_forward.1} parent=5 // pred_check
        _
      $region10: #{rb1_forward.1} parent=5 // pred_check_branch
        %140 = sbr.rel (%p137) target = $region12
      $region11: #{rb1_forward.1} parent=5 // pred_region
        %s141 = ssub.s32 %s17, 1
        // Predicated region
        $region13: #{rb1_forward.1} parent=11 // pred_check
          %p142 = pneg %p78
        $region14: #{rb1_forward.1} parent=11 // pred_check_branch
          %144 = sbr.rel (%p142) target = $region16
        $region15: #{rb1_forward.1} parent=11 // pred_region
          %s146 = ssub.s32 16, 16
          %147 = vsyncadd [#allocation6], %s146
          %150 = dma.hbm_to_smem %s1, 16, [#allocation8], [#allocation6]
        $region16: #{rb1_forward.1} parent=11 // pred_fallthru
          _
        // Predicated region
        $region17: #{rb1_forward.1} parent=11 // pred_check
          %p151 = pneg %p99
        $region18: #{rb1_forward.1} parent=11 // pred_check_branch
          %153 = sbr.rel (%p151) target = $region20
        $region19: #{rb1_forward.1} parent=11 // pred_region
          %s155 = ssub.s32 16, 16
          %156 = vsyncadd [#allocation7], %s155
          %s158 = sshll.u32 %s2, 4
          %s159 = int_to_ptr.vmem [resolvable:$true] %s158
          %161 = dma.vmem_to_smem %s159, 16, [#allocation9], [#allocation7]
        $region20: #{rb1_forward.1} parent=11 // pred_fallthru
          _
      $region12: #{rb1_forward.1} parent=5 // pred_fallthru
        _
      %p162 = scmp.lt.s32.totalorder %s17, 8
      // Predicated region
      $region21: #{rb1_forward.1} parent=5 // pred_check
        %p163 = pneg %p162
      $region22: #{rb1_forward.1} parent=5 // pred_check_branch
        %165 = sbr.rel (%p163) target = $region24
      $region23: #{rb1_forward.1} parent=5 // pred_region
        // Predicated region
        $region25: #{rb1_forward.1} parent=23 // pred_check
          %p166 = pneg %p51
        $region26: #{rb1_forward.1} parent=23 // pred_check_branch
          %168 = sbr.rel (%p166) target = $region28
        $region27: #{rb1_forward.1} parent=23 // pred_region
          %s169 = sand.u32 %s41, 1
          %s170 = scalar_lea.sflag [#allocation4], %s169
          %s171 = sand.u32 %s41, 1
          %s172 = smul.addr %s171, 16
          %s173 = scalar_lea.vmem [#allocation3], %s172
          %s175 = ssub.s32 256, 256
          %176 = vsyncadd %s170, %s175
          %s177 = smul.addr %s25, 2
          %s178 = smul.addr %s24, 8
          %s179 = sadd.s32 %s177, %s178
          %s180 = smul.addr %s179, 128
          %s181 = scalar_lea.hbm %s0, %s180
          %s182 = sshll.u32 %s173, 4
          %s183 = int_to_ptr.vmem [resolvable:$true] %s182
          %188 = dma.hbm_to_vmem [thread:$0]  %s181, 256, %s183, %s170, 128, 128, 8
        $region28: #{rb1_forward.1} parent=23 // pred_fallthru
          _
      $region24: #{rb1_forward.1} parent=5 // pred_fallthru
        _
      %p189 = scmp.le.s32.totalorder 1, %s17
      %p190 = scmp.lt.s32.totalorder %s17, 9
      %p191 = pnand %p189, %p190
      %p192 = pneg %p191
      // Predicated region
      $region29: #{rb1_forward.1} parent=5 // pred_check
        _
      $region30: #{rb1_forward.1} parent=5 // pred_check_branch
        %194 = sbr.rel (%p191) target = $region32
      $region31: #{rb1_forward.1} parent=5 // pred_region
        %s195 = ssub.s32 %s17, 1
        %s196 = sand.u32 %s44, 1
        %s197 = scalar_lea.sflag [#allocation4], %s196
        %s198 = sand.u32 %s44, 1
        %s199 = smul.addr %s198, 16
        %s200 = scalar_lea.vmem [#allocation3], %s199
        // Predicated region
        $region33: #{rb1_forward.1} parent=31 // pred_check
          %p201 = pneg %p57
        $region34: #{rb1_forward.1} parent=31 // pred_check_branch
          %203 = sbr.rel (%p201) target = $region36
        $region35: #{rb1_forward.1} parent=31 // pred_region
          %204 = dma.done %s197, 256
        $region36: #{rb1_forward.1} parent=31 // pred_fallthru
          _
        // Predicated region
        $region37: #{rb1_forward.1} parent=31 // pred_check
          %p205 = pneg %p78
        $region38: #{rb1_forward.1} parent=31 // pred_check_branch
          %207 = sbr.rel (%p205) target = $region40
        $region39: #{rb1_forward.1} parent=31 // pred_region
          %208 = dma.done [#allocation6], 16
        $region40: #{rb1_forward.1} parent=31 // pred_fallthru
          _
        // Predicated region
        $region41: #{rb1_forward.1} parent=31 // pred_check
          %p209 = pneg %p99
        $region42: #{rb1_forward.1} parent=31 // pred_check_branch
          %211 = sbr.rel (%p209) target = $region44
        $region43: #{rb1_forward.1} parent=31 // pred_region
          %212 = dma.done [#allocation7], 16
        $region44: #{rb1_forward.1} parent=31 // pred_fallthru
          _
        %213 = sfence
        %s214 = sand.u32 %s44, 1
        %s215 = scalar_lea.sflag [#allocation4], %s214
        %s216 = sand.u32 %s44, 1
        %s217 = smul.addr %s216, 16
        %s218 = scalar_lea.vmem [#allocation3], %s217
        %p219 = pneg %p57
        %p220 = pneg %p54
        %p221 = pneg %p78
        %p222 = pneg %p75
        %p223 = pneg %p99
        %p224 = pneg %p96
        %p225 = pneg %p127
        %p226 = pneg %p124
        %s227 = sand.u32 %s114, 1
        %s228 = scalar_lea.sflag [#allocation5], %s227
        %s229 = sand.u32 %s114, 1
        %s230 = smul.addr %s229, 16
        %s231 = scalar_lea.vmem [#allocation10], %s230
        %s232 = smul.u32 %s27, 9
        %vm233 = vcmask 139264
        %234 = vst.msk [vmem:[#allocation2 + $0x7] sm:$0x1] %vm233, 0.0
        %235 = vst.msk [vmem:[#allocation2 + $0x18] sm:$0x1] %vm233, 0.0
        %vm236 = vcmask 7168
        %237 = vst.msk [vmem:[#allocation2 + $0x8] sm:$0xff] %vm236, 0.0
        %238 = vst.msk [vmem:[#allocation2 + $0x10] sm:$0xff] %vm236, 0.0
        %vm239 = vcmask 146568
        %240 = vst.msk [vmem:[#allocation2 + $0x8] sm:$0xff] %vm239, 0.0
        %241 = vst.msk [vmem:[#allocation2 + $0x10] sm:$0xff] %vm239, 0.0
        %v242 = vld [vmem:[%s200] sm:$0xff]
        %v243 = vld [vmem:[%s200 + $0x8] sm:$0xff]
        %246 = vrot.lane.b32.xlu0 %v242, 1
        %v247 = vpop.permute.xlu0 %246
        %248 = vrot.lane.b32.xlu0 %v243, 1
        %v249 = vpop.permute.xlu0 %248
        %vm252 = vcmask 138248
        %253 = vst.msk [vmem:[#allocation2 + $0x8] sm:$0xff] %vm252, %v247
        %254 = vst.msk [vmem:[#allocation2 + $0x10] sm:$0xff] %vm252, %v249
        %v255 = vld [vmem:[#allocation2 + $0x7] sm:$0xff]
        %v256 = vld [vmem:[#allocation2 + $0xf] sm:$0xff]
        %s257 = sld [smem:[#allocation8 + %s232]]
        %v258 = vstv %s257
        %v259 = vmul.f32 %v255, %v258
        %v260 = vmul.f32 %v256, %v258
        %s261 = sadd.s32 %s232, 1
        %s262 = sld [smem:[#allocation8 + %s261]]
        %v263 = vstv %s262
        %v264 = vmul.f32 %v255, %v263
        %v265 = vmul.f32 %v256, %v263
        %268 = vrot.lane.b32.xlu0 %v264, 127
        %v269 = vpop.permute.xlu0 %268
        %270 = vrot.lane.b32.xlu0 %v265, 127
        %v271 = vpop.permute.xlu0 %270
        %v274 = vadd.f32 %v259, %v269
        %v275 = vadd.f32 %v260, %v271
        %s276 = sadd.s32 %s232, 2
        %s277 = sld [smem:[#allocation8 + %s276]]
        %v278 = vstv %s277
        %v279 = vmul.f32 %v255, %v278
        %v280 = vmul.f32 %v256, %v278
        %283 = vrot.lane.b32.xlu0 %v279, 126
        %v284 = vpop.permute.xlu0 %283
        %285 = vrot.lane.b32.xlu0 %v280, 126
        %v286 = vpop.permute.xlu0 %285
        %v289 = vadd.f32 %v274, %v284
        %v290 = vadd.f32 %v275, %v286
        %v291 = vld [vmem:[#allocation2 + $0x8] sm:$0xff]
        %v292 = vld [vmem:[#allocation2 + $0x10] sm:$0xff]
        %s293 = sadd.s32 %s232, 3
        %s294 = sld [smem:[#allocation8 + %s293]]
        %v295 = vstv %s294
        %v296 = vmul.f32 %v291, %v295
        %v297 = vmul.f32 %v292, %v295
        %v298 = vadd.f32 %v289, %v296
        %v299 = vadd.f32 %v290, %v297
        %s300 = sadd.s32 %s232, 4
        %s301 = sld [smem:[#allocation8 + %s300]]
        %v302 = vstv %s301
        %v303 = vmul.f32 %v291, %v302
        %v304 = vmul.f32 %v292, %v302
        %307 = vrot.lane.b32.xlu0 %v303, 127
        %v308 = vpop.permute.xlu0 %307
        %309 = vrot.lane.b32.xlu0 %v304, 127
        %v310 = vpop.permute.xlu0 %309
        %v313 = vadd.f32 %v298, %v308
        %v314 = vadd.f32 %v299, %v310
        %s315 = sadd.s32 %s232, 5
        %s316 = sld [smem:[#allocation8 + %s315]]
        %v317 = vstv %s316
        %v318 = vmul.f32 %v291, %v317
        %v319 = vmul.f32 %v292, %v317
        %322 = vrot.lane.b32.xlu0 %v318, 126
        %v323 = vpop.permute.xlu0 %322
        %324 = vrot.lane.b32.xlu0 %v319, 126
        %v325 = vpop.permute.xlu0 %324
        %v328 = vadd.f32 %v313, %v323
        %v329 = vadd.f32 %v314, %v325
        %v330 = vld [vmem:[#allocation2 + $0x9] sm:$0xff]
        %v331 = vld [vmem:[#allocation2 + $0x11] sm:$0xff]
        %s332 = sadd.s32 %s232, 6
        %s333 = sld [smem:[#allocation8 + %s332]]
        %v334 = vstv %s333
        %v335 = vmul.f32 %v330, %v334
        %v336 = vmul.f32 %v331, %v334
        %v337 = vadd.f32 %v328, %v335
        %v338 = vadd.f32 %v329, %v336
        %s339 = sadd.s32 %s232, 7
        %s340 = sld [smem:[#allocation8 + %s339]]
        %v341 = vstv %s340
        %v342 = vmul.f32 %v330, %v341
        %v343 = vmul.f32 %v331, %v341
        %346 = vrot.lane.b32.xlu0 %v342, 127
        %v347 = vpop.permute.xlu0 %346
        %348 = vrot.lane.b32.xlu0 %v343, 127
        %v349 = vpop.permute.xlu0 %348
        %v352 = vadd.f32 %v337, %v347
        %v353 = vadd.f32 %v338, %v349
        %s354 = sadd.s32 %s232, 8
        %s355 = sld [smem:[#allocation8 + %s354]]
        %v356 = vstv %s355
        %v357 = vmul.f32 %v330, %v356
        %v358 = vmul.f32 %v331, %v356
        %361 = vrot.lane.b32.xlu0 %v357, 126
        %v362 = vpop.permute.xlu0 %361
        %363 = vrot.lane.b32.xlu0 %v358, 126
        %v364 = vpop.permute.xlu0 %363
        %v367 = vadd.f32 %v352, %v362
        %v368 = vadd.f32 %v353, %v364
        %vm369 = vcmask 130048
        %v370 = vsel %vm369, %v367, 0.0
        %371 = vadd.xlane.f32.xlu0 %v370
        %v372 = vpop.xlane.xlu0 %371
        %v373 = vsel %vm369, %v368, 0.0
        %374 = vadd.xlane.f32.xlu0 %v373
        %v375 = vpop.xlane.xlu0 %374
        %v376 = vadd.f32 %v372, %v375
        %v377 = vrot.slane %v376, 4
        %v378 = vadd.f32 %v376, %v377
        %v379 = vrot.slane %v378, 2
        %v380 = vadd.f32 %v378, %v379
        %v381 = vrot.slane %v380, 1
        %v382 = vadd.f32 %v380, %v381
        %v383 = vmul.f32 %v367, %v367
        %v384 = vmul.f32 %v368, %v368
        %v385 = vsel %vm369, %v383, 0.0
        %386 = vadd.xlane.f32.xlu0 %v385
        %v387 = vpop.xlane.xlu0 %386
        %v388 = vsel %vm369, %v384, 0.0
        %389 = vadd.xlane.f32.xlu0 %v388
        %v390 = vpop.xlane.xlu0 %389
        %v391 = vadd.f32 %v387, %v390
        %v392 = vrot.slane %v391, 4
        %v393 = vadd.f32 %v391, %v392
        %v394 = vrot.slane %v393, 2
        %v395 = vadd.f32 %v393, %v394
        %v396 = vrot.slane %v395, 1
        %v397 = vadd.f32 %v395, %v396
        %v398 = vmul.f32 %v382, 0.00390625
        %v399 = vmul.f32 %v397, 0.00390625
        %v400 = vmul.f32 %v398, %v398
        %v401 = vsub.f32 %v399, %v400
        %v402 = vmax.f32 %v401, 0.0
        %v403 = vsub.f32 %v367, %v398
        %v404 = vsub.f32 %v368, %v398
        %v405 = vadd.f32 %v402, 1e-05
        %v406 = vrsqrt.pop %v405
        %v407 = vmul.f32 %v403, %v406
        %v408 = vmul.f32 %v404, %v406
        %v409 = vmul.f32 %v407, 0.1
        %v410 = vmul.f32 %v408, 0.1
        %v411 = vmax.f32 %v407, %v409
        %v412 = vmax.f32 %v408, %v410
        %v413 = vld [vmem:[%s200] sm:$0xff]
        %v414 = vld [vmem:[%s200 + $0x8] sm:$0xff]
        %v415 = vadd.f32 %v411, %v413
        %v416 = vadd.f32 %v412, %v414
        %419 = vrot.lane.b32.xlu0 %v415, 1
        %v420 = vpop.permute.xlu0 %419
        %421 = vrot.lane.b32.xlu0 %v416, 1
        %v422 = vpop.permute.xlu0 %421
        %425 = vst.msk [vmem:[#allocation2 + $0x8] sm:$0xff] %vm252, %v420
        %426 = vst.msk [vmem:[#allocation2 + $0x10] sm:$0xff] %vm252, %v422
        %v427 = vld [vmem:[#allocation2 + $0x7] sm:$0xff]
        %v428 = vld [vmem:[#allocation2 + $0xf] sm:$0xff]
        %s429 = sld [smem:[#allocation9 + %s232]]
        %v430 = vstv %s429
        %v431 = vmul.f32 %v427, %v430
        %v432 = vmul.f32 %v428, %v430
        %s433 = sld [smem:[#allocation9 + %s261]]
        %v434 = vstv %s433
        %v435 = vmul.f32 %v427, %v434
        %v436 = vmul.f32 %v428, %v434
        %439 = vrot.lane.b32.xlu0 %v435, 127
        %v440 = vpop.permute.xlu0 %439
        %441 = vrot.lane.b32.xlu0 %v436, 127
        %v442 = vpop.permute.xlu0 %441
        %v445 = vadd.f32 %v431, %v440
        %v446 = vadd.f32 %v432, %v442
        %s447 = sld [smem:[#allocation9 + %s276]]
        %v448 = vstv %s447
        %v449 = vmul.f32 %v427, %v448
        %v450 = vmul.f32 %v428, %v448
        %453 = vrot.lane.b32.xlu0 %v449, 126
        %v454 = vpop.permute.xlu0 %453
        %455 = vrot.lane.b32.xlu0 %v450, 126
        %v456 = vpop.permute.xlu0 %455
        %v459 = vadd.f32 %v445, %v454
        %v460 = vadd.f32 %v446, %v456
        %v461 = vld [vmem:[#allocation2 + $0x8] sm:$0xff]
        %v462 = vld [vmem:[#allocation2 + $0x10] sm:$0xff]
        %s463 = sld [smem:[#allocation9 + %s293]]
        %v464 = vstv %s463
        %v465 = vmul.f32 %v461, %v464
        %v466 = vmul.f32 %v462, %v464
        %v467 = vadd.f32 %v459, %v465
        %v468 = vadd.f32 %v460, %v466
        %s469 = sld [smem:[#allocation9 + %s300]]
        %v470 = vstv %s469
        %v471 = vmul.f32 %v461, %v470
        %v472 = vmul.f32 %v462, %v470
        %475 = vrot.lane.b32.xlu0 %v471, 127
        %v476 = vpop.permute.xlu0 %475
        %477 = vrot.lane.b32.xlu0 %v472, 127
        %v478 = vpop.permute.xlu0 %477
        %v481 = vadd.f32 %v467, %v476
        %v482 = vadd.f32 %v468, %v478
        %s483 = sld [smem:[#allocation9 + %s315]]
        %v484 = vstv %s483
        %v485 = vmul.f32 %v461, %v484
        %v486 = vmul.f32 %v462, %v484
        %489 = vrot.lane.b32.xlu0 %v485, 126
        %v490 = vpop.permute.xlu0 %489
        %491 = vrot.lane.b32.xlu0 %v486, 126
        %v492 = vpop.permute.xlu0 %491
        %v495 = vadd.f32 %v481, %v490
        %v496 = vadd.f32 %v482, %v492
        %v497 = vld [vmem:[#allocation2 + $0x9] sm:$0xff]
        %v498 = vld [vmem:[#allocation2 + $0x11] sm:$0xff]
        %s499 = sld [smem:[#allocation9 + %s332]]
        %v500 = vstv %s499
        %v501 = vmul.f32 %v497, %v500
        %v502 = vmul.f32 %v498, %v500
        %v503 = vadd.f32 %v495, %v501
        %v504 = vadd.f32 %v496, %v502
        %s505 = sld [smem:[#allocation9 + %s339]]
        %v506 = vstv %s505
        %v507 = vmul.f32 %v497, %v506
        %v508 = vmul.f32 %v498, %v506
        %511 = vrot.lane.b32.xlu0 %v507, 127
        %v512 = vpop.permute.xlu0 %511
        %513 = vrot.lane.b32.xlu0 %v508, 127
        %v514 = vpop.permute.xlu0 %513
        %v517 = vadd.f32 %v503, %v512
        %v518 = vadd.f32 %v504, %v514
        %s519 = sld [smem:[#allocation9 + %s354]]
        %v520 = vstv %s519
        %v521 = vmul.f32 %v497, %v520
        %v522 = vmul.f32 %v498, %v520
        %525 = vrot.lane.b32.xlu0 %v521, 126
        %v526 = vpop.permute.xlu0 %525
        %527 = vrot.lane.b32.xlu0 %v522, 126
        %v528 = vpop.permute.xlu0 %527
        %v531 = vadd.f32 %v517, %v526
        %v532 = vadd.f32 %v518, %v528
        %v533 = vsel %vm369, %v531, 0.0
        %534 = vadd.xlane.f32.xlu0 %v533
        %v535 = vpop.xlane.xlu0 %534
        %v536 = vsel %vm369, %v532, 0.0
        %537 = vadd.xlane.f32.xlu0 %v536
        %v538 = vpop.xlane.xlu0 %537
        %v539 = vadd.f32 %v535, %v538
        %v540 = vrot.slane %v539, 4
        %v541 = vadd.f32 %v539, %v540
        %v542 = vrot.slane %v541, 2
        %v543 = vadd.f32 %v541, %v542
        %v544 = vrot.slane %v543, 1
        %v545 = vadd.f32 %v543, %v544
        %v546 = vmul.f32 %v531, %v531
        %v547 = vmul.f32 %v532, %v532
        %v548 = vsel %vm369, %v546, 0.0
        %549 = vadd.xlane.f32.xlu0 %v548
        %v550 = vpop.xlane.xlu0 %549
        %v551 = vsel %vm369, %v547, 0.0
        %552 = vadd.xlane.f32.xlu0 %v551
        %v553 = vpop.xlane.xlu0 %552
        %v554 = vadd.f32 %v550, %v553
        %v555 = vrot.slane %v554, 4
        %v556 = vadd.f32 %v554, %v555
        %v557 = vrot.slane %v556, 2
        %v558 = vadd.f32 %v556, %v557
        %v559 = vrot.slane %v558, 1
        %v560 = vadd.f32 %v558, %v559
        %v561 = vmul.f32 %v545, 0.00390625
        %v562 = vmul.f32 %v560, 0.00390625
        %v563 = vmul.f32 %v561, %v561
        %v564 = vsub.f32 %v562, %v563
        %v565 = vmax.f32 %v564, 0.0
        %v566 = vsub.f32 %v531, %v561
        %v567 = vsub.f32 %v532, %v561
        %v568 = vadd.f32 %v565, 1e-05
        %v569 = vrsqrt.pop %v568
        %v570 = vmul.f32 %v566, %v569
        %v571 = vmul.f32 %v567, %v569
        %v572 = vmul.f32 %v570, 0.1
        %v573 = vmul.f32 %v571, 0.1
        %v574 = vmax.f32 %v570, %v572
        %v575 = vmax.f32 %v571, %v573
        %v576 = vld [vmem:[%s200] sm:$0xff]
        %v577 = vld [vmem:[%s200 + $0x8] sm:$0xff]
        %v578 = vadd.f32 %v576, %v411
        %v579 = vadd.f32 %v577, %v412
        %v580 = vadd.f32 %v578, %v574
        %v581 = vadd.f32 %v579, %v575
        %582 = vst.msk [vmem:[%s231] sm:$0xff] %vm369, %v580
        %583 = vst.msk [vmem:[%s231 + $0x8] sm:$0xff] %vm369, %v581
        %s584 = sand.u32 %s114, 1
        %s585 = scalar_lea.sflag [#allocation5], %s584
        %s586 = sand.u32 %s114, 1
        %s587 = smul.addr %s586, 16
        %s588 = scalar_lea.vmem [#allocation10], %s587
        // Predicated region
        $region45: #{rb1_forward.1} parent=31 // pred_check
          %p589 = pneg %p124
        $region46: #{rb1_forward.1} parent=31 // pred_check_branch
          %591 = sbr.rel (%p589) target = $region48
        $region47: #{rb1_forward.1} parent=31 // pred_region
          %s593 = ssub.s32 256, 256
          %594 = vsyncadd %s585, %s593
          %s595 = smul.addr %s27, 2
          %s596 = smul.addr %s26, 8
          %s597 = sadd.s32 %s595, %s596
          %s598 = smul.addr %s597, 128
          %s599 = scalar_lea.hbm %s3, %s598
          %s600 = sshll.u32 %s588, 4
          %s601 = int_to_ptr.vmem [resolvable:$true] %s600
          %606 = dma.vmem_to_hbm [thread:$0]  %s601, 256, %s599, %s585, 128, 128, 8
        $region48: #{rb1_forward.1} parent=31 // pred_fallthru
          _
      $region32: #{rb1_forward.1} parent=5 // pred_fallthru
        _
      %p607 = scmp.le.s32.totalorder 2, %s17
      // Predicated region
      $region49: #{rb1_forward.1} parent=5 // pred_check
        %p608 = pneg %p607
      $region50: #{rb1_forward.1} parent=5 // pred_check_branch
        %610 = sbr.rel (%p608) target = $region52
      $region51: #{rb1_forward.1} parent=5 // pred_region
        %s611 = ssub.s32 %s17, 2
        // Predicated region
        $region53: #{rb1_forward.1} parent=51 // pred_check
          %p612 = pneg %p130
        $region54: #{rb1_forward.1} parent=51 // pred_check_branch
          %614 = sbr.rel (%p612) target = $region56
        $region55: #{rb1_forward.1} parent=51 // pred_region
          %s615 = sand.u32 %s115, 1
          %s616 = scalar_lea.sflag [#allocation5], %s615
          %s617 = sand.u32 %s115, 1
          %s618 = smul.addr %s617, 16
          %s619 = scalar_lea.vmem [#allocation10], %s618
          %620 = dma.done %s616, 256
        $region56: #{rb1_forward.1} parent=51 // pred_fallthru
          _
      $region52: #{rb1_forward.1} parent=5 // pred_fallthru
        _
    $region6: #{rb1_forward.1} parent=1 // loop_footer
      %s21 = sadd.s32 1, %s17
    $region7: #{rb1_forward.1} parent=1 // loop_footer_branch
      %16 = sbr.rel target = $region3
    $region8: #{rb1_forward.1} parent=1 // loop_exit
      _
    %621 = vsyncpa [#allocation4], 1
    %s622 = scalar_lea.sflag [#allocation4], 1
    %623 = vsyncpa %s622, 1
    %624 = vsyncpa [#allocation5], 1
    %s625 = scalar_lea.sflag [#allocation5], 1
    %626 = vsyncpa %s625, 1
    %627 = vsyncpa [#allocation6], 1
    %s628 = scalar_lea.sflag [#allocation6], 1
    %629 = vsyncpa %s628, 1
    %630 = vsyncpa [#allocation7], 1
    %s631 = scalar_lea.sflag [#allocation7], 1
    %632 = vsyncpa %s631, 1

</llo_original>
